<compile_context>
chip_gen: v7x
topology: tpu7x:2x2x1
jax: 0.10.0
libtpu: 0.0.40
codegen_flags: <defaults>
</compile_context>

<pallas_src>
import functools

import jax
import jax.numpy as jnp
from jax.experimental import pallas as pl
from jax.experimental.pallas import tpu as pltpu


# ----------------------------------------------------------------------------
# sizing helpers
# ----------------------------------------------------------------------------

def _vmem_budget_bytes():
    """Usable scoped-VMEM budget (generation aware).

    ~48 MiB on v7x (64 MiB physical), ~96 MiB on v5e/v6e (128 MiB physical).
    Falls back to a conservative 48 MiB if the query is unavailable.
    """
    try:
        cap = int(pltpu.get_tpu_info().vmem_capacity_bytes)
    except Exception:
        cap = 64 << 20  # conservative: safe on every generation
    return (cap * 3) // 4


def _pick_batch_block(B, slab_bytes, target_bytes):
    """Largest divisor TB of B with TB*slab_bytes <= target_bytes, preferring
    >= 4 grid steps (else >= 2) so both v7x TensorCores get work and the
    in/out DMAs overlap compute instead of serializing."""
    divisors = [d for d in range(1, B + 1) if B % d == 0]
    fitting = [d for d in divisors if d * slab_bytes <= target_bytes] or [1]
    for min_steps in (4, 2):
        ok = [d for d in fitting if B // d >= min_steps]
        if ok:
            return max(ok)
    return max(fitting)


def _pick_length_tile(L, C, itemsize, target_bytes):
    """Largest 128-multiple divisor TL of L with C*TL*itemsize <= target_bytes,
    preferring at least 2 L-tiles.  None if no 128-multiple divisor fits."""
    fitting = [tl for tl in range(128, L + 1, 128)
               if L % tl == 0 and C * tl * itemsize <= target_bytes]
    if not fitting:
        return None
    multi = [tl for tl in fitting if L // tl >= 2]
    return max(multi) if multi else max(fitting)


# ----------------------------------------------------------------------------
# kernels
# ----------------------------------------------------------------------------

def _conv_sigmoid_gate(y, taps_ref):
    """y: (..., C, 1) f32 per-channel means -> sigmoid(conv1d_K(y)), same shape.

    K-tap zero-padded cross-correlation along the channel (sublane) axis.
    Taps are read as scalars from SMEM; K is tiny & static -> fully unrolled.
    """
    K = taps_ref.shape[0]
    pad = (K - 1) // 2
    C = y.shape[-2]
    acc = jnp.zeros_like(y)
    for j in range(K):                      # out[c] += w[j] * y[c + j - pad]
        shift = j - pad
        if shift < 0:
            zeros = jnp.zeros(y.shape[:-2] + (-shift, 1), y.dtype)
            shifted = jnp.concatenate([zeros, y[..., : C + shift, :]], axis=-2)
        elif shift > 0:
            zeros = jnp.zeros(y.shape[:-2] + (shift, 1), y.dtype)
            shifted = jnp.concatenate([y[..., shift:, :], zeros], axis=-2)
        else:
            shifted = y
        acc = acc + taps_ref[j] * shifted   # scalar tap * vector
    return jax.nn.sigmoid(acc)


def _eca_fused_kernel(w_ref, x_ref, o_ref):
    """Single-pass kernel: full (C, L) slab(s) per grid step."""
    x = x_ref[...]                                       # native dtype slab
    l = x.shape[-1]                                      # static
    # f32 accumulation of the mean; keepdims keeps channel on sublanes so the
    # gate is already laid out for the broadcast multiply below.
    y = jnp.sum(x.astype(jnp.float32), axis=-1, keepdims=True) * (1.0 / l)
    gate = _conv_sigmoid_gate(y, w_ref)                  # (TB, C, 1) f32
    o_ref[...] = (x * gate.astype(x.dtype)).astype(o_ref.dtype)


def _eca_gate_kernel(w_ref, x_ref, g_ref, *, l_total):
    """Pass 1 (tiled path): accumulate per-channel sums over L tiles, then
    conv + sigmoid on the last tile.  g_ref: (1, C, 1) f32, resident across
    the (last, "arbitrary") L grid axis."""
    li = pl.program_id(1)

    @pl.when(li == 0)
    def _():
        g_ref[...] = jnp.zeros_like(g_ref)

    g_ref[...] += jnp.sum(x_ref[...].astype(jnp.float32), axis=-1, keepdims=True)

    @pl.when(li == pl.num_programs(1) - 1)
    def _():
        y = g_ref[...] * (1.0 / l_total)
        g_ref[...] = _conv_sigmoid_gate(y, w_ref)


def _eca_mul_kernel(x_ref, g_ref, o_ref):
    """Pass 2 (tiled path): streaming broadcast multiply in the input dtype."""
    x = x_ref[...]
    o_ref[...] = (x * g_ref[...].astype(x.dtype)).astype(o_ref.dtype)


# ----------------------------------------------------------------------------
# wrappers
# ----------------------------------------------------------------------------

def _eca_single_pass(x, w, target_block, budget):
    B, C, L = x.shape
    itemsize = jnp.dtype(x.dtype).itemsize
    slab_bytes = C * L * itemsize
    TB = _pick_batch_block(B, slab_bytes, target_block)
    block_bytes = TB * slab_bytes
    block_f32 = TB * C * L * 4
    # in + out, double-buffered, plus the possible f32 reduce intermediate,
    # plus slack; capped at the generation-aware budget (never exceeds v7x's
    # physical 64 MiB).
    vmem_limit = int(min(budget, max(32 << 20,
                                     4 * block_bytes + block_f32 + (2 << 20))))

    cost = pl.CostEstimate(
        flops=3 * B * C * L,                 # f32 reduce-add + broadcast mul
        transcendentals=B * C,               # sigmoid
        bytes_accessed=2 * B * C * L * itemsize)

    return pl.pallas_call(
        _eca_fused_kernel,
        out_shape=jax.ShapeDtypeStruct((B, C, L), x.dtype),
        grid_spec=pltpu.PrefetchScalarGridSpec(
            num_scalar_prefetch=0,
            grid=(B // TB,),
            in_specs=[
                # (K,) conv taps -> SMEM, read as scalars in the kernel.
                pl.BlockSpec(memory_space=pltpu.MemorySpace.SMEM),
                # x: TB batch elements per grid step, full (C, L) slab.
                pl.BlockSpec((TB, C, L), lambda b: (b, 0, 0)),
            ],
            out_specs=pl.BlockSpec((TB, C, L), lambda b: (b, 0, 0)),
        ),
        compiler_params=pltpu.CompilerParams(
            dimension_semantics=("parallel",),
            vmem_limit_bytes=vmem_limit),
        cost_estimate=cost,
    )(w, x)


def _eca_two_pass(x, w, tl, budget):
    B, C, L = x.shape
    itemsize = jnp.dtype(x.dtype).itemsize
    n_l = L // tl
    tile_bytes = C * tl * itemsize
    tile_f32 = C * tl * 4

    # ---- pass 1: per-channel mean over L (accumulated across L tiles), then
    #      conv + sigmoid on the last tile -> gate (B, C, 1) in f32 ----
    vmem_a = int(min(budget, max(32 << 20,
                                 2 * tile_bytes + tile_f32 + (2 << 20))))
    gate = pl.pallas_call(
        functools.partial(_eca_gate_kernel, l_total=L),
        out_shape=jax.ShapeDtypeStruct((B, C, 1), jnp.float32),
        grid_spec=pltpu.PrefetchScalarGridSpec(
            num_scalar_prefetch=0,
            grid=(B, n_l),
            in_specs=[
                pl.BlockSpec(memory_space=pltpu.MemorySpace.SMEM),
                pl.BlockSpec((1, C, tl), lambda b, l: (b, 0, l)),
            ],
            out_specs=pl.BlockSpec((1, C, 1), lambda b, l: (b, 0, 0)),
        ),
        compiler_params=pltpu.CompilerParams(
            dimension_semantics=("parallel", "arbitrary"),
            vmem_limit_bytes=vmem_a),
        cost_estimate=pl.CostEstimate(
            flops=B * C * L,
            transcendentals=B * C,
            bytes_accessed=B * C * L * itemsize + B * C * 4),
    )(w, x)

    # ---- pass 2: out = x * gate (broadcast over L), streaming L tiles ----
    vmem_b = int(min(budget, max(32 << 20, 4 * tile_bytes + (4 << 20))))
    return pl.pallas_call(
        _eca_mul_kernel,
        out_shape=jax.ShapeDtypeStruct((B, C, L), x.dtype),
        grid_spec=pltpu.PrefetchScalarGridSpec(
            num_scalar_prefetch=0,
            grid=(B, n_l),
            in_specs=[
                pl.BlockSpec((1, C, tl), lambda b, l: (b, 0, l)),
                pl.BlockSpec((1, C, 1), lambda b, l: (b, 0, 0)),
            ],
            out_specs=pl.BlockSpec((1, C, tl), lambda b, l: (b, 0, l)),
        ),
        compiler_params=pltpu.CompilerParams(
            dimension_semantics=("parallel", "parallel"),
            vmem_limit_bytes=vmem_b),
        cost_estimate=pl.CostEstimate(
            flops=B * C * L,
            transcendentals=0,
            bytes_accessed=2 * B * C * L * itemsize + B * C * 4),
    )(x, gate)


def channel_eca(x, conv_weight, *, _force_two_pass=False):
    """ECA forward.  x: (B, C, L); conv_weight: (K,) Conv1d(1,1,K,bias=False) taps."""
    B, C, L = x.shape
    itemsize = jnp.dtype(x.dtype).itemsize
    budget = _vmem_budget_bytes()
    # ~8 MiB blocks on v7x, ~12 MiB on v5e/v6e: big enough to amortize the
    # ~0.35 us/step grid overhead, small enough that double-buffered in+out
    # plus the f32 reduce intermediate stays well inside VMEM.
    target_block = min(budget // 6, 12 << 20)

    w = conv_weight.reshape(-1).astype(jnp.float32)

    slab_bytes = C * L * itemsize
    single_pass_cost = 4 * slab_bytes + C * L * 4 + (2 << 20)
    if not _force_two_pass and single_pass_cost <= budget:
        return _eca_single_pass(x, w, target_block, budget)

    # Large (C, L) slab (or forced): tile the length axis, two passes over x.
    tl = _pick_length_tile(L, C, itemsize, target_block)
    if tl is None:
        # TODO(synk): no 128-multiple divisor of L fits the budget (awkward L
        # with huge C*L) — fall back to the single-slab kernel with the full
        # VMEM budget rather than producing wrong numbers.
        return _eca_single_pass(x, w, target_block, budget)
    return _eca_two_pass(x, w, tl, budget)


def channel_eca_ref(x, conv_weight):
    """Pure-JAX reference mirroring the PyTorch module."""
    y = jnp.mean(x, axis=-1)                                    # (B, C)
    K = conv_weight.shape[0]
    pad = (K - 1) // 2
    yp = jnp.pad(y, ((0, 0), (pad, pad)))
    C = y.shape[1]
    conv = jnp.zeros_like(y)
    for j in range(K):
        conv = conv + conv_weight[j] * yp[:, j:j + C]
    gate = jax.nn.sigmoid(conv)
    return x * gate[:, :, None]


if __name__ == "__main__":
    key = jax.random.PRNGKey(0)
    kx, kw, kx2, kx3 = jax.random.split(key, 4)

    # --- 1) fused single-pass path, f32, small module-consistent shapes ---
    B, C, L, K = 2, 4, 16, 3
    x = jax.random.normal(kx, (B, C, L), dtype=jnp.float32)
    conv_w = jax.random.normal(kw, (K,), dtype=jnp.float32) * 0.5

    out = jax.block_until_ready(channel_eca(x, conv_w))
    ref = channel_eca_ref(x, conv_w)
    assert out.shape == x.shape
    assert jnp.allclose(out, ref, atol=1e-5, rtol=1e-5), "f32 fused mismatch"

    # --- 2) bf16 input through the fused path (gate math in f32, multiply in
    #        bf16 -> bf16-appropriate tolerance vs f32 reference) ---
    xb = jax.random.normal(kx2, (B, C, L), dtype=jnp.float32).astype(jnp.bfloat16)
    outb = jax.block_until_ready(channel_eca(xb, conv_w))
    refb = channel_eca_ref(xb.astype(jnp.float32), conv_w)
    assert jnp.allclose(outb.astype(jnp.float32), refb, atol=5e-2, rtol=5e-2), \
        "bf16 fused mismatch"

    # --- 3) L-tiled two-pass path (the path large C*L slabs take on v7x),
    #        forced here at a small, 128-multiple L so it is exercised ---
    B2, C2, L2, K2 = 2, 8, 512, 5
    x2 = jax.random.normal(kx3, (B2, C2, L2), dtype=jnp.float32)
    conv_w2 = jax.random.normal(kw, (K2,), dtype=jnp.float32) * 0.5
    out2 = jax.block_until_ready(channel_eca(x2, conv_w2, _force_two_pass=True))
    ref2 = channel_eca_ref(x2, conv_w2)
    assert jnp.allclose(out2, ref2, atol=1e-5, rtol=1e-5), "two-pass mismatch"

    print("KERNEL_OK")
</pallas_src>

<mosaic_0001>
module attributes {stable_mosaic.version = 11 : i64} {
  func.func @_eca_fused_kernel(%arg0: i32, %arg1: memref<3xf32, #tpu.memory_space<smem>>, %arg2: memref<1x4x16xf32, #tpu.memory_space<vmem>>, %arg3: memref<1x4x16xf32, #tpu.memory_space<vmem>>) attributes {dimension_semantics = [#tpu.dimension_semantics<parallel>], iteration_bounds = array<i64: 2>, scalar_prefetch = 0 : i64, scratch_operands = 0 : i64, tpu.core_type = #tpu.core_type<tc>, window_params = [{transform_indices = @transform_0, window_bounds = array<i64: 3>}, {transform_indices = @transform_1, window_bounds = array<i64: 1, 4, 16>}, {transform_indices = @transform_2, window_bounds = array<i64: 1, 4, 16>}]} {
    %c0 = arith.constant 0 : index
    %c0_0 = arith.constant 0 : index
    %c0_1 = arith.constant 0 : index
    %0 = vector.load %arg2[%c0, %c0_0, %c0_1] : memref<1x4x16xf32, #tpu.memory_space<vmem>>, vector<1x4x16xf32>
    %cst = arith.constant dense<0.000000e+00> : vector<1x4xf32>
    %1 = vector.multi_reduction <add>, %0, %cst [2] : vector<1x4x16xf32> to vector<1x4xf32>
    %2 = vector.shape_cast %1 : vector<1x4xf32> to vector<1x4x1xf32>
    %cst_2 = arith.constant 6.250000e-02 : f32
    %3 = vector.broadcast %cst_2 : f32 to vector<1x4x1xf32>
    %4 = arith.mulf %2, %3 : vector<1x4x1xf32>
    %cst_3 = arith.constant 0.000000e+00 : f32
    %5 = vector.broadcast %cst_3 : f32 to vector<1x4x1xf32>
    %cst_4 = arith.constant 0.000000e+00 : f32
    %6 = vector.broadcast %cst_4 : f32 to vector<1x1x1xf32>
    %7 = vector.extract_strided_slice %4 {offsets = [0, 0, 0], sizes = [1, 3, 1], strides = [1, 1, 1]} : vector<1x4x1xf32> to vector<1x3x1xf32>
    %8 = tpu.concatenate %6, %7 in 1 : vector<1x1x1xf32>, vector<1x3x1xf32> -> vector<1x4x1xf32>
    %c0_5 = arith.constant 0 : index
    %9 = memref.load %arg1[%c0_5] : memref<3xf32, #tpu.memory_space<smem>>
    %10 = vector.broadcast %9 : f32 to vector<1x4x1xf32>
    %11 = arith.mulf %10, %8 : vector<1x4x1xf32>
    %12 = arith.addf %5, %11 : vector<1x4x1xf32>
    %c1 = arith.constant 1 : index
    %13 = memref.load %arg1[%c1] : memref<3xf32, #tpu.memory_space<smem>>
    %14 = vector.broadcast %13 : f32 to vector<1x4x1xf32>
    %15 = arith.mulf %14, %4 : vector<1x4x1xf32>
    %16 = arith.addf %12, %15 : vector<1x4x1xf32>
    %cst_6 = arith.constant 0.000000e+00 : f32
    %17 = vector.broadcast %cst_6 : f32 to vector<1x1x1xf32>
    %18 = vector.extract_strided_slice %4 {offsets = [0, 1, 0], sizes = [1, 3, 1], strides = [1, 1, 1]} : vector<1x4x1xf32> to vector<1x3x1xf32>
    %19 = tpu.concatenate %18, %17 in 1 : vector<1x3x1xf32>, vector<1x1x1xf32> -> vector<1x4x1xf32>
    %c2 = arith.constant 2 : index
    %20 = memref.load %arg1[%c2] : memref<3xf32, #tpu.memory_space<smem>>
    %21 = vector.broadcast %20 : f32 to vector<1x4x1xf32>
    %22 = arith.mulf %21, %19 : vector<1x4x1xf32>
    %23 = arith.addf %16, %22 : vector<1x4x1xf32>
    %24 = arith.negf %23 : vector<1x4x1xf32>
    %25 = math.exp %24 : vector<1x4x1xf32>
    %cst_7 = arith.constant 1.000000e+00 : f32
    %26 = vector.broadcast %cst_7 : f32 to vector<1x4x1xf32>
    %27 = arith.addf %26, %25 : vector<1x4x1xf32>
    %28 = arith.divf %26, %27 : vector<1x4x1xf32>
    %29 = vector.broadcast %28 : vector<1x4x1xf32> to vector<1x4x16xf32>
    %30 = arith.mulf %0, %29 : vector<1x4x16xf32>
    %c0_8 = arith.constant 0 : index
    %c0_9 = arith.constant 0 : index
    %c0_10 = arith.constant 0 : index
    %31 = vector.load %arg3[%c0_8, %c0_9, %c0_10] : memref<1x4x16xf32, #tpu.memory_space<vmem>>, vector<1x4x16xf32>
    tpu.vector_store %arg3[%c0_8, %c0_9, %c0_10], %30 {strides = array<i32>} : memref<1x4x16xf32, #tpu.memory_space<vmem>>, vector<1x4x16xf32>,
    return
  }
  func.func @transform_0(%arg0: i32) -> i32 {
    %c0_i32 = arith.constant 0 : i32
    %c0_i32_0 = arith.constant 0 : i32
    return %c0_i32 : i32
  }
  func.func @transform_1(%arg0: i32) -> (i32, i32, i32) {
    %c0_i32 = arith.constant 0 : i32
    %c0_i32_0 = arith.constant 0 : i32
    %c0_i32_1 = arith.constant 0 : i32
    return %arg0, %c0_i32, %c0_i32_0 : i32, i32, i32
  }
  func.func @transform_2(%arg0: i32) -> (i32, i32, i32) {
    %c0_i32 = arith.constant 0 : i32
    %c0_i32_0 = arith.constant 0 : i32
    %c0_i32_1 = arith.constant 0 : i32
    return %arg0, %c0_i32, %c0_i32_0 : i32, i32, i32
  }
}

</mosaic_0001>

<llo_original>
// kernel: tpu_custom_call.1
$region0: #{tpu_custom_call.1}
  #allocation0 [shape = 'u32[]', space=smem, size = 0x4, offset = 0x4, fixed_abs, tag = 'smem constant byte address 0x4 - core index']
  #allocation1 [shape = 'u32[144,128]{1,0:T(1,128)}', space=vmem, size = 0x12000, scoped, tag = 'internal scratch']
  %s0 = inlined_call_operand.hbm [shape: f32[3], index: 0, kind: input, shape index: {}]
  %s1 = inlined_call_operand.hbm [shape: f32[2,4,16], index: 1, kind: input, shape index: {}]
  %s2 = inlined_call_operand.hbm [shape: f32[2,4,16], index: 2, kind: output, shape index: {}]
  %s3 = sld [smem:[#allocation0]]
  $region49: #{tpu_custom_call.1} parent=0
    _
  %s5 = ssub.s32 1, %s3
  %s6 = scalar_select 0, %s5, %s3
  $region1: #{tpu_custom_call.1} parent=0
    #allocation2 [shape = 'u8[512]{0}', space=smem, size = 0x200, scoped, tag = 'input window, operand 0, single buffered']
    #allocation3 [shape = 's32[2]{0}', space=sflag, size = 0x8, scoped, tag = 'scoped memory for tpu_custom_call.1']
    #allocation4 [shape = 's32[2]{0}', space=sflag, size = 0x8, scoped, tag = 'scoped memory for tpu_custom_call.1']
    #allocation5 [shape = 's32[2]{0}', space=sflag, size = 0x8, scoped, tag = 'scoped memory for tpu_custom_call.1']
    #allocation6 [shape = 'u8[4096]{0}', space=vmem, size = 0x1000, scoped, tag = 'input window, operand 1']
    #allocation7 [shape = 'u8[4096]{0}', space=vmem, size = 0x1000, scoped, tag = 'output window, operand 0']
    %7 = vsyncpa [#allocation5], 0
    %8 = vsyncpa [#allocation3], 0
    %s9 = scalar_lea.sflag [#allocation3], 1
    %10 = vsyncpa %s9, 0
    %11 = vsyncpa [#allocation4], 0
    %s12 = scalar_lea.sflag [#allocation4], 1
    %13 = vsyncpa %s12, 0
    loop: start=0, step=1, limit=4
    $region2: #{tpu_custom_call.1} parent=1 // loop_pre_header
      _
    $region3: #{tpu_custom_call.1} parent=1 // loop_header
      %s15 = sphi 0, %s19
      %p16 = scmp.ge.s32.totalorder %s15, 4
      %s23 = sphi 0, %s23
      %s25 = sphi 0, %s23
      %s26 = sphi 0, %s25
      %s40 = sphi 0, %s26
      %s46 = sphi 0, %s48
      %s49 = sphi 0, %s46
      %s50 = sphi 0, %s49
      %s66 = sphi 0, %s50
      %s72 = sphi 0, %s74
      %s75 = sphi 0, %s72
      %s76 = sphi 0, %s75
      %s92 = sphi 0, %s76
    $region4: #{tpu_custom_call.1} parent=1 // loop_header_branch
      %18 = sbr.rel (%p16) target = $region8
    $region5: #{tpu_custom_call.1} parent=1 // loop_body
      %s20 = ssub.s32 %s15, 1
      %s21 = ssub.s32 %s15, 2
      %s22 = sadd.s32 %s15, 1
      %s24 = sadd.s32 %s23, 1
      %p27 = scmp.eq.s32.totalorder %s15, 1
      %p28 = scmp.ne.s32.totalorder %s23, %s25
      %p29 = scmp.eq.s32.totalorder %s15, 0
      %p30 = por %p28, %p29
      %p31 = scmp.ne.s32.totalorder %s23, %s25
      %p32 = scmp.eq.s32.totalorder %s20, 1
      %p33 = por %p31, %p32
      %p34 = scmp.ne.s32.totalorder %s25, %s26
      %p35 = scmp.eq.s32.totalorder %s20, 0
      %p36 = por %p34, %p35
      %p37 = scmp.ne.s32.totalorder %s25, %s26
      %p38 = scmp.eq.s32.totalorder %s21, 1
      %p39 = por %p37, %p38
      %p41 = scmp.ne.s32.totalorder %s26, %s40
      %p42 = scmp.eq.s32.totalorder %s21, 0
      %p43 = por %p41, %p42
      %s44 = ssub.s32 %s15, %s22
      %p45 = scmp.eq.s32.totalorder %s44, 0
      %s47 = sadd.s32 %s46, 1
      %s48 = scalar_select %p45, %s46, %s47
      %p51 = pneg %p45
      %p52 = scmp.eq.s32.totalorder %s15, 1
      %p53 = por %p51, %p52
      %p54 = scmp.ne.s32.totalorder %s46, %s49
      %p55 = scmp.eq.s32.totalorder %s15, 0
      %p56 = por %p54, %p55
      %p57 = scmp.ne.s32.totalorder %s46, %s49
      %p58 = scmp.eq.s32.totalorder %s20, 1
      %p59 = por %p57, %p58
      %p60 = scmp.ne.s32.totalorder %s49, %s50
      %p61 = scmp.eq.s32.totalorder %s20, 0
      %p62 = por %p60, %p61
      %p63 = scmp.ne.s32.totalorder %s49, %s50
      %p64 = scmp.eq.s32.totalorder %s21, 1
      %p65 = por %p63, %p64
      %p67 = scmp.ne.s32.totalorder %s50, %s66
      %p68 = scmp.eq.s32.totalorder %s21, 0
      %p69 = por %p67, %p68
      %s70 = ssub.s32 %s15, %s22
      %p71 = scmp.eq.s32.totalorder %s70, 0
      %s73 = sadd.s32 %s72, 1
      %s74 = scalar_select %p71, %s72, %s73
      %p77 = pneg %p71
      %p78 = scmp.eq.s32.totalorder %s15, 1
      %p79 = por %p77, %p78
      %p80 = scmp.ne.s32.totalorder %s72, %s75
      %p81 = scmp.eq.s32.totalorder %s15, 0
      %p82 = por %p80, %p81
      %p83 = scmp.ne.s32.totalorder %s72, %s75
      %p84 = scmp.eq.s32.totalorder %s20, 1
      %p85 = por %p83, %p84
      %p86 = scmp.ne.s32.totalorder %s75, %s76
      %p87 = scmp.eq.s32.totalorder %s20, 0
      %p88 = por %p86, %p87
      %p89 = scmp.ne.s32.totalorder %s75, %s76
      %p90 = scmp.eq.s32.totalorder %s21, 1
      %p91 = por %p89, %p90
      %p93 = scmp.ne.s32.totalorder %s76, %s92
      %p94 = scmp.eq.s32.totalorder %s21, 0
      %p95 = por %p93, %p94
      %p96 = scmp.le.s32.totalorder 1, %s15
      %p97 = scmp.lt.s32.totalorder %s15, 3
      %p98 = pnand %p96, %p97
      %p99 = pneg %p98
      // Predicated region
      $region9: #{tpu_custom_call.1} parent=5 // pred_check
        _
      $region10: #{tpu_custom_call.1} parent=5 // pred_check_branch
        %101 = sbr.rel (%p98) target = $region12
      $region11: #{tpu_custom_call.1} parent=5 // pred_region
        %s102 = ssub.s32 %s15, 1
        // Predicated region
        $region13: #{tpu_custom_call.1} parent=11 // pred_check
          %p103 = pneg %p36
        $region14: #{tpu_custom_call.1} parent=11 // pred_check_branch
          %105 = sbr.rel (%p103) target = $region16
        $region15: #{tpu_custom_call.1} parent=11 // pred_region
          %s107 = ssub.s32 16, 16
          %108 = vsyncadd [#allocation5], %s107
          %111 = dma.hbm_to_smem %s0, 16, [#allocation2], [#allocation5]
        $region16: #{tpu_custom_call.1} parent=11 // pred_fallthru
          _
      $region12: #{tpu_custom_call.1} parent=5 // pred_fallthru
        _
      %p112 = scmp.lt.s32.totalorder %s15, 2
      // Predicated region
      $region17: #{tpu_custom_call.1} parent=5 // pred_check
        %p113 = pneg %p112
      $region18: #{tpu_custom_call.1} parent=5 // pred_check_branch
        %115 = sbr.rel (%p113) target = $region20
      $region19: #{tpu_custom_call.1} parent=5 // pred_region
        // Predicated region
        $region21: #{tpu_custom_call.1} parent=19 // pred_check
          %p116 = pneg %p56
        $region22: #{tpu_custom_call.1} parent=19 // pred_check_branch
          %118 = sbr.rel (%p116) target = $region24
        $region23: #{tpu_custom_call.1} parent=19 // pred_region
          %s119 = sand.u32 %s46, 1
          %s120 = scalar_lea.sflag [#allocation3], %s119
          %s121 = sand.u32 %s46, 1
          %s122 = smul.addr %s121, 4
          %s123 = scalar_lea.vmem [#allocation6], %s122
          %s125 = ssub.s32 64, 64
          %126 = vsyncadd %s120, %s125
          %s127 = smul.addr %s15, 64
          %s128 = scalar_lea.hbm %s1, %s127
          %s130 = sshll.u32 %s123, 4
          %s131 = int_to_ptr.vmem [resolvable:$true] %s130
          %133 = dma.hbm_to_vmem [thread:$0]  %s128, 64, %s131, %s120
        $region24: #{tpu_custom_call.1} parent=19 // pred_fallthru
          _
      $region20: #{tpu_custom_call.1} parent=5 // pred_fallthru
        _
      %p134 = scmp.le.s32.totalorder 1, %s15
      %p135 = scmp.lt.s32.totalorder %s15, 3
      %p136 = pnand %p134, %p135
      %p137 = pneg %p136
      // Predicated region
      $region25: #{tpu_custom_call.1} parent=5 // pred_check
        _
      $region26: #{tpu_custom_call.1} parent=5 // pred_check_branch
        %139 = sbr.rel (%p136) target = $region28
      $region27: #{tpu_custom_call.1} parent=5 // pred_region
        %s140 = ssub.s32 %s15, 1
        // Predicated region
        $region29: #{tpu_custom_call.1} parent=27 // pred_check
          %p141 = pneg %p36
        $region30: #{tpu_custom_call.1} parent=27 // pred_check_branch
          %143 = sbr.rel (%p141) target = $region32
        $region31: #{tpu_custom_call.1} parent=27 // pred_region
          %144 = dma.done [#allocation5], 16
        $region32: #{tpu_custom_call.1} parent=27 // pred_fallthru
          _
        %s145 = sand.u32 %s49, 1
        %s146 = scalar_lea.sflag [#allocation3], %s145
        %s147 = sand.u32 %s49, 1
        %s148 = smul.addr %s147, 4
        %s149 = scalar_lea.vmem [#allocation6], %s148
        // Predicated region
        $region33: #{tpu_custom_call.1} parent=27 // pred_check
          %p150 = pneg %p62
        $region34: #{tpu_custom_call.1} parent=27 // pred_check_branch
          %152 = sbr.rel (%p150) target = $region36
        $region35: #{tpu_custom_call.1} parent=27 // pred_region
          %153 = dma.done %s146, 64
        $region36: #{tpu_custom_call.1} parent=27 // pred_fallthru
          _
        %154 = sfence
        %p155 = pneg %p36
        %p156 = pneg %p33
        %s157 = sand.u32 %s49, 1
        %s158 = scalar_lea.sflag [#allocation3], %s157
        %s159 = sand.u32 %s49, 1
        %s160 = smul.addr %s159, 4
        %s161 = scalar_lea.vmem [#allocation6], %s160
        %p162 = pneg %p62
        %p163 = pneg %p59
        %p164 = pneg %p88
        %p165 = pneg %p85
        %s166 = sand.u32 %s75, 1
        %s167 = scalar_lea.sflag [#allocation4], %s166
        %s168 = sand.u32 %s75, 1
        %s169 = smul.addr %s168, 4
        %s170 = scalar_lea.vmem [#allocation7], %s169
        %v171 = vld [vmem:[%s149] sm:$0xf]
        %vm172 = vcmask 125952
        %v173 = vsel %vm172, %v171, 0.0
        %174 = vadd.xlane.f32.xlu0 %v173
        %v175 = vpop.xlane.xlu0 %174
        %v176 = vmul.f32 %v175, 0.0625
        %v178 = vrot.slane %v176, 7
        %vm180 = vcmask 1040384
        %v181 = vsel %vm180, 0.0, %v178
        %s182 = sld [smem:[#allocation2]]
        %v183 = vstv %s182
        %v184 = vmul.f32 %v183, %v181
        %v185 = vadd.f32 %v184, 0.0
        %s186 = sld [smem:[#allocation2 + $0x1]]
        %v187 = vstv %s186
        %v188 = vmul.f32 %v187, %v176
        %v189 = vadd.f32 %v185, %v188
        %v190 = vrot.slane %v176, 1
        %vm192 = vcmask 1042432
        %v193 = vsel %vm192, %v190, 0.0
        %s194 = sld [smem:[#allocation2 + $0x2]]
        %v195 = vstv %s194
        %v196 = vmul.f32 %v195, %v193
        %v197 = vadd.f32 %v189, %v196
        %v198 = vxor.u32 %v197, 2147483648
        %v199 = vmul.f32 %v198, 1.442695
        %v200 = vpow.pop %v199
        %v201 = vadd.f32 %v200, 1.0
        %v202 = vrcp.pop %v201
        %v203 = vmul.f32 1.0, %v202
        %205 = vset.pattern.permute.xlu0 0
        %206 = vperm.xlu0 %205, %v203
        %v207 = vpop.permute.xlu0 %206
        %v209 = vmul.f32 %v171, %v207
        %210 = vst.msk [vmem:[%s170] sm:$0xf] %vm172, %v209
        %s211 = sand.u32 %s75, 1
        %s212 = scalar_lea.sflag [#allocation4], %s211
        %s213 = sand.u32 %s75, 1
        %s214 = smul.addr %s213, 4
        %s215 = scalar_lea.vmem [#allocation7], %s214
        // Predicated region
        $region37: #{tpu_custom_call.1} parent=27 // pred_check
          %p216 = pneg %p85
        $region38: #{tpu_custom_call.1} parent=27 // pred_check_branch
          %218 = sbr.rel (%p216) target = $region40
        $region39: #{tpu_custom_call.1} parent=27 // pred_region
          %s220 = ssub.s32 64, 64
          %221 = vsyncadd %s212, %s220
          %s222 = smul.addr %s20, 64
          %s223 = scalar_lea.hbm %s2, %s222
          %s225 = sshll.u32 %s215, 4
          %s226 = int_to_ptr.vmem [resolvable:$true] %s225
          %228 = dma.vmem_to_hbm [thread:$0]  %s226, 64, %s223, %s212
        $region40: #{tpu_custom_call.1} parent=27 // pred_fallthru
          _
      $region28: #{tpu_custom_call.1} parent=5 // pred_fallthru
        _
      %p229 = scmp.le.s32.totalorder 2, %s15
      // Predicated region
      $region41: #{tpu_custom_call.1} parent=5 // pred_check
        %p230 = pneg %p229
      $region42: #{tpu_custom_call.1} parent=5 // pred_check_branch
        %232 = sbr.rel (%p230) target = $region44
      $region43: #{tpu_custom_call.1} parent=5 // pred_region
        %s233 = ssub.s32 %s15, 2
        // Predicated region
        $region45: #{tpu_custom_call.1} parent=43 // pred_check
          %p234 = pneg %p91
        $region46: #{tpu_custom_call.1} parent=43 // pred_check_branch
          %236 = sbr.rel (%p234) target = $region48
        $region47: #{tpu_custom_call.1} parent=43 // pred_region
          %s237 = sand.u32 %s76, 1
          %s238 = scalar_lea.sflag [#allocation4], %s237
          %s239 = sand.u32 %s76, 1
          %s240 = smul.addr %s239, 4
          %s241 = scalar_lea.vmem [#allocation7], %s240
          %242 = dma.done %s238, 64
        $region48: #{tpu_custom_call.1} parent=43 // pred_fallthru
          _
      $region44: #{tpu_custom_call.1} parent=5 // pred_fallthru
        _
    $region6: #{tpu_custom_call.1} parent=1 // loop_footer
      %s19 = sadd.s32 1, %s15
    $region7: #{tpu_custom_call.1} parent=1 // loop_footer_branch
      %14 = sbr.rel target = $region3
    $region8: #{tpu_custom_call.1} parent=1 // loop_exit
      _
    %243 = vsyncpa [#allocation3], 1
    %s244 = scalar_lea.sflag [#allocation3], 1
    %245 = vsyncpa %s244, 1
    %246 = vsyncpa [#allocation4], 1
    %s247 = scalar_lea.sflag [#allocation4], 1
    %248 = vsyncpa %s247, 1
    %249 = vsyncpa [#allocation5], 1
    %s250 = scalar_lea.sflag [#allocation5], 1
    %251 = vsyncpa %s250, 1

</llo_original>
